<compile_context>
chip_gen: v7x
topology: tpu7x:2x2x1
jax: 0.10.0
libtpu: 0.0.40
codegen_flags: <defaults>
</compile_context>

<pallas_src>
import numpy as np
import jax
import jax.numpy as jnp
from jax import lax
from jax.experimental import pallas as pl
from jax.experimental.pallas import tpu as pltpu

# Flip to jnp.bfloat16 on v6e/v7x if ~1e-3 relative error on cos_theta is
# acceptable (halves mu HBM traffic, restores bf16 MXU peak, halves the (B,B)
# cos writeback).  Kept f32 so the strict checks in __main__ pass.
_MU_DTYPE = jnp.float32
_COS_DTYPE = jnp.float32


def pc_loss_kernel(mu_r_ref, mu_c_ref, pm_r_ref, pm_c_ref, lab_r_ref, lab_c_ref,
                   psum_ref, cos_ref, pos_ref):
    """One (t, t) tile of cos_theta + masked-L2 partial sum.

    Grid (ni, nj): axis 0 "parallel" (per-row-block psum output indexed by i
    only), axis 1 "arbitrary" (reduction axis over which psum accumulates).
    """
    i = pl.program_id(0)
    j = pl.program_id(1)

    @pl.when(j == 0)
    def _init():
        psum_ref[0, 0] = 0.0

    # cos tile = mu_r @ mu_c.T, contracting the feature dim of BOTH operands
    # (no XLU transpose before the MXU push).  mu is already F.normalize()'d
    # and detached (forward no-op) in the wrapper.
    cos = lax.dot_general(mu_r_ref[...], mu_c_ref[...],
                          (((1,), (1,)), ((), ())),
                          preferred_element_type=jnp.float32)        # (t, t)
    cos_ref[...] = cos.astype(cos_ref.dtype)

    # Masked L2.  p_fuse = min(p_mean_row, p_mean_col) via broadcast.
    lm = (lab_r_ref[...] == lab_c_ref[...]).astype(jnp.float32)      # (t, t)
    d = cos - jnp.minimum(pm_r_ref[...], pm_c_ref[...])
    sq = d * d

    # Only diagonal blocks need the self-pair exclusion; off-diagonal blocks
    # (the vast majority of the grid) skip the two (t, t) iotas entirely.
    @pl.when(i != j)
    def _off_diag():
        pos_ref[...] = lm.astype(jnp.int8)
        psum_ref[0, 0] += jnp.sum(sq * lm)

    @pl.when(i == j)
    def _diag():
        r = lax.broadcasted_iota(jnp.int32, lm.shape, 0)
        c = lax.broadcasted_iota(jnp.int32, lm.shape, 1)
        pos = jnp.where(r == c, 0.0, lm)
        pos_ref[...] = pos.astype(jnp.int8)
        psum_ref[0, 0] += jnp.sum(sq * pos)


def _vmem_footprint(t, d, mu_bytes, cos_bytes):
    mu = 2 * 2 * t * d * mu_bytes           # double-buffered mu row + col tiles
    outs = 2 * t * t * (cos_bytes + 1)      # double-buffered cos (f32/bf16) + int8 pos
    vecs = 2 * 2 * t * (4 + 4)              # p_mean / label row+col vectors
    return mu + outs + vecs


def _pick_tile(b_pad, d, mu_bytes, cos_bytes):
    if b_pad <= 128:
        return b_pad                         # single full-array block
    budget = 40 * 1024 * 1024                # fits v7x's 64 MiB/TC with headroom
    for cand in (512, 256, 128):
        if b_pad % cand == 0 and _vmem_footprint(cand, d, mu_bytes, cos_bytes) <= budget:
            return cand
    # TODO(synk): for very large D even t=128 can overflow VMEM; tile D as a
    # third "arbitrary" grid axis with a VMEM f32 accumulator in that case.
    return 128


@jax.jit
def _pc_loss_core(mu_X, p_X, label):
    B, D = mu_X.shape

    # --- hoisted prep (one fused XLA pass each, per perf review) -------------
    mu = mu_X.astype(jnp.float32)
    mu_n = mu / jnp.maximum(
        jnp.sqrt(jnp.sum(mu * mu, axis=-1, keepdims=True)), 1e-12)   # F.normalize
    mu_n = mu_n.astype(_MU_DTYPE)            # mu_X.detach() is a forward no-op
    p_mean = jnp.mean(1.0 - p_X.astype(jnp.float32), axis=-1, keepdims=True)  # (B,1)
    label = label.astype(jnp.int32)

    # Positive-pair count from labels alone (off-diagonal same-label pairs);
    # removes a per-tile cross-lane reduction from the kernel.
    count = jnp.sum((label[:, None] == label[None, :]).astype(jnp.float32)) \
        - jnp.float32(B)

    # --- pad B up to a multiple of 128 → lane-dense (unmasked) output stores -
    if B < 128:
        Bp, pad = B, 0
    else:
        Bp = ((B + 127) // 128) * 128
        pad = Bp - B
    if pad > 0:
        mu_n = jnp.pad(mu_n, ((0, pad), (0, 0)))
        p_mean_p = jnp.pad(p_mean, ((0, pad), (0, 0)))
        # Padded labels get unique values above every real label → never match.
        sentinel = jnp.max(label) + 1 + jnp.arange(pad, dtype=jnp.int32)
        lab_p = jnp.concatenate([label, sentinel])
    else:
        p_mean_p = p_mean
        lab_p = label

    mu_bytes = jnp.dtype(_MU_DTYPE).itemsize
    cos_bytes = jnp.dtype(_COS_DTYPE).itemsize
    t = _pick_tile(Bp, D, mu_bytes, cos_bytes)
    ni = Bp // t
    grid = (ni, ni)

    lab_col = lab_p.reshape(Bp, 1)
    lab_row = lab_p.reshape(1, Bp)
    pm_col = p_mean_p.reshape(Bp, 1)
    pm_row = p_mean_p.reshape(1, Bp)

    in_specs = [
        pl.BlockSpec((t, D), lambda i, j: (i, 0)),   # mu row tile (normalized)
        # TODO(synk): if profiling shows this streamed tile's DMA exposed at
        # small D, add pipeline_mode=pl.Buffered(3) and re-check VMEM budget.
        pl.BlockSpec((t, D), lambda i, j: (j, 0)),   # mu col tile (normalized)
        pl.BlockSpec((t, 1), lambda i, j: (i, 0)),   # p_mean (B, 1)
        pl.BlockSpec((1, t), lambda i, j: (0, j)),   # p_mean (1, B)
        pl.BlockSpec((t, 1), lambda i, j: (i, 0)),   # label  (B, 1)
        pl.BlockSpec((1, t), lambda i, j: (0, j)),   # label  (1, B)
    ]
    out_specs = (
        pl.BlockSpec((1, 1), lambda i, j: (i, 0),
                     memory_space=pltpu.MemorySpace.SMEM),  # per-row-block sum
        pl.BlockSpec((t, t), lambda i, j: (i, j)),          # cos_theta
        pl.BlockSpec((t, t), lambda i, j: (i, j)),          # pos_mask (int8)
    )
    out_shape = (
        jax.ShapeDtypeStruct((ni, 1), jnp.float32),
        jax.ShapeDtypeStruct((Bp, Bp), _COS_DTYPE),
        jax.ShapeDtypeStruct((Bp, Bp), jnp.int8),
    )

    cost = pl.CostEstimate(
        flops=2 * Bp * Bp * D,
        transcendentals=0,
        bytes_accessed=(ni + 1) * Bp * D * mu_bytes
                       + Bp * Bp * (cos_bytes + 1) + Bp * 16,
    )
    vmem_limit = min(
        max(int(1.5 * _vmem_footprint(t, D, mu_bytes, cos_bytes)) + (1 << 20),
            32 * 1024 * 1024),
        64 * 1024 * 1024)

    psum, cos, pos = pl.pallas_call(
        pc_loss_kernel,
        out_shape=out_shape,
        grid=grid,
        in_specs=in_specs,
        out_specs=out_specs,
        compiler_params=pltpu.CompilerParams(
            dimension_semantics=("parallel", "arbitrary"),
            vmem_limit_bytes=vmem_limit),
        cost_estimate=cost,
    )(mu_n, mu_n, pm_col, pm_row, lab_col, lab_row)

    # 0/0 = NaN when no positive pairs exist (matches torch's mean of empty).
    loss = jnp.sum(psum) / count
    return loss, cos[:B, :B], pos[:B, :B], p_mean


def pc_loss(mu_X, p_X, label):
    """Returns (loss_pos, end_points), matching the PyTorch module forward."""
    loss_pos, cos, pos, pconf = _pc_loss_core(mu_X, p_X, label)
    pos_mask = pos > 0
    end_points = {
        "pconf": pconf,                       # (B, 1) = (1 - p_X).mean(-1, keepdim=True)
        "cos_theta": cos,                     # full Gram matrix (device, extra)
        "pos_mask": pos_mask,                 # device bool mask (extra)
        # TODO(synk): torch's cos_theta[pos_mask] has a data-dependent shape, so
        # this boolean gather runs eagerly (device->host sync for the nonzero
        # count).  Callers that can consume (cos_theta, pos_mask) should.
        "cos": cos[pos_mask],
    }
    return loss_pos, end_points


def _reference(mu_X, p_X, label):
    mu = np.asarray(mu_X, np.float32)
    p = 1.0 - np.asarray(p_X, np.float32)
    lab = np.asarray(label)
    B = mu.shape[0]
    n = np.maximum(np.linalg.norm(mu, axis=-1, keepdims=True), 1e-12)
    mu_n = mu / n
    p_mean = p.mean(axis=-1, keepdims=True)
    cos = mu_n @ mu_n.T
    label_mask = (lab[:, None] == lab[None, :]).astype(np.int32)
    non_diag = (1 - np.eye(B)).astype(np.int32)
    pos_mask = (non_diag * label_mask) > 0
    p_fuse = np.minimum(p_mean, p_mean.T)
    loss = (cos - p_fuse) ** 2
    return loss[pos_mask].mean(), cos[pos_mask], p_mean


if __name__ == "__main__":
    key = jax.random.PRNGKey(0)
    k1, k2, k3 = jax.random.split(key, 3)

    B, D, K = 8, 32, 4
    mu_X = jax.random.normal(k1, (B, D), dtype=jnp.float32)
    p_X = jax.random.uniform(k2, (B, K), dtype=jnp.float32)
    label = jax.random.randint(k3, (B,), 0, 3, dtype=jnp.int32)

    loss_pos, end_points = pc_loss(mu_X, p_X, label)
    loss_pos = jax.block_until_ready(loss_pos)
    jax.block_until_ready(end_points["pconf"])
    jax.block_until_ready(end_points["cos"])

    ref_loss, ref_cos, ref_pconf = _reference(mu_X, p_X, label)
    assert np.allclose(float(loss_pos), ref_loss, rtol=1e-5, atol=1e-5), (
        float(loss_pos), float(ref_loss))
    assert np.allclose(np.asarray(end_points["cos"]), ref_cos,
                       rtol=1e-5, atol=1e-5)
    assert np.allclose(np.asarray(end_points["pconf"]), ref_pconf,
                       rtol=1e-6, atol=1e-6)

    print("KERNEL_OK")
</pallas_src>

<mosaic_0001>
module attributes {stable_mosaic.version = 11 : i64} {
  func.func @pc_loss_kernel(%arg0: i32, %arg1: i32, %arg2: memref<8x32xf32, #tpu.memory_space<vmem>>, %arg3: memref<8x32xf32, #tpu.memory_space<vmem>>, %arg4: memref<8x1xf32, #tpu.memory_space<vmem>>, %arg5: memref<1x8xf32, #tpu.memory_space<vmem>>, %arg6: memref<8x1xi32, #tpu.memory_space<vmem>>, %arg7: memref<1x8xi32, #tpu.memory_space<vmem>>, %arg8: memref<1x1xf32, #tpu.memory_space<smem>>, %arg9: memref<8x8xf32, #tpu.memory_space<vmem>>, %arg10: memref<8x8xi8, #tpu.memory_space<vmem>>) attributes {dimension_semantics = [#tpu.dimension_semantics<parallel>, #tpu.dimension_semantics<arbitrary>], iteration_bounds = array<i64: 1, 1>, scalar_prefetch = 0 : i64, scratch_operands = 0 : i64, tpu.core_type = #tpu.core_type<tc>, window_params = [{transform_indices = @transform_0, window_bounds = array<i64: 8, 32>}, {transform_indices = @transform_1, window_bounds = array<i64: 8, 32>}, {transform_indices = @transform_2, window_bounds = array<i64: 8, 1>}, {transform_indices = @transform_3, window_bounds = array<i64: 1, 8>}, {transform_indices = @transform_4, window_bounds = array<i64: 8, 1>}, {transform_indices = @transform_5, window_bounds = array<i64: 1, 8>}, {transform_indices = @transform_6, window_bounds = array<i64: 1, 1>}, {transform_indices = @transform_7, window_bounds = array<i64: 8, 8>}, {transform_indices = @transform_8, window_bounds = array<i64: 8, 8>}]} {
    %c0_i32 = arith.constant 0 : i32
    %0 = arith.cmpi eq, %arg1, %c0_i32 : i32
    %1 = arith.extui %0 : i1 to i32
    %c0_i32_0 = arith.constant 0 : i32
    %2 = arith.cmpi ne, %1, %c0_i32_0 : i32
    scf.if %2 {
      %cst_16 = arith.constant 0.000000e+00 : f32
      %c0_17 = arith.constant 0 : index
      %c0_18 = arith.constant 0 : index
      %27 = memref.load %arg8[%c0_17, %c0_18] : memref<1x1xf32, #tpu.memory_space<smem>>
      memref.store %cst_16, %arg8[%c0_17, %c0_18] : memref<1x1xf32, #tpu.memory_space<smem>>
    } else {
    }
    %c0 = arith.constant 0 : index
    %c0_1 = arith.constant 0 : index
    %3 = vector.load %arg2[%c0, %c0_1] : memref<8x32xf32, #tpu.memory_space<vmem>>, vector<8x32xf32>
    %c0_2 = arith.constant 0 : index
    %c0_3 = arith.constant 0 : index
    %4 = vector.load %arg3[%c0_2, %c0_3] : memref<8x32xf32, #tpu.memory_space<vmem>>, vector<8x32xf32>
    %cst = arith.constant dense<0.000000e+00> : vector<8x8xf32>
    %5 = tpu.matmul %3, %4, %cst {dimension_numbers = #tpu.dot_dimension_numbers<[1], [1], [0], [0], [0, 0, 1, 0], [], []>} : vector<8x32xf32>, vector<8x32xf32>, vector<8x8xf32> -> vector<8x8xf32>
    %c0_4 = arith.constant 0 : index
    %c0_5 = arith.constant 0 : index
    %6 = vector.load %arg9[%c0_4, %c0_5] : memref<8x8xf32, #tpu.memory_space<vmem>>, vector<8x8xf32>
    tpu.vector_store %arg9[%c0_4, %c0_5], %5 {strides = array<i32>} : memref<8x8xf32, #tpu.memory_space<vmem>>, vector<8x8xf32>,
    %c0_6 = arith.constant 0 : index
    %c0_7 = arith.constant 0 : index
    %7 = vector.load %arg6[%c0_6, %c0_7] : memref<8x1xi32, #tpu.memory_space<vmem>>, vector<8x1xi32>
    %c0_8 = arith.constant 0 : index
    %c0_9 = arith.constant 0 : index
    %8 = vector.load %arg7[%c0_8, %c0_9] : memref<1x8xi32, #tpu.memory_space<vmem>>, vector<1x8xi32>
    %9 = vector.broadcast %7 : vector<8x1xi32> to vector<8x8xi32>
    %10 = vector.broadcast %8 : vector<1x8xi32> to vector<8x8xi32>
    %11 = arith.cmpi eq, %9, %10 : vector<8x8xi32>
    %12 = arith.extui %11 : vector<8x8xi1> to vector<8x8xi32>
    %13 = arith.sitofp %12 : vector<8x8xi32> to vector<8x8xf32>
    %c0_10 = arith.constant 0 : index
    %c0_11 = arith.constant 0 : index
    %14 = vector.load %arg4[%c0_10, %c0_11] : memref<8x1xf32, #tpu.memory_space<vmem>>, vector<8x1xf32>
    %c0_12 = arith.constant 0 : index
    %c0_13 = arith.constant 0 : index
    %15 = vector.load %arg5[%c0_12, %c0_13] : memref<1x8xf32, #tpu.memory_space<vmem>>, vector<1x8xf32>
    %16 = vector.broadcast %14 : vector<8x1xf32> to vector<8x8xf32>
    %17 = vector.broadcast %15 : vector<1x8xf32> to vector<8x8xf32>
    %18 = arith.minimumf %16, %17 : vector<8x8xf32>
    %19 = arith.subf %5, %18 : vector<8x8xf32>
    %20 = arith.mulf %19, %19 : vector<8x8xf32>
    %21 = arith.cmpi ne, %arg0, %arg1 : i32
    %22 = arith.extui %21 : i1 to i32
    %c0_i32_14 = arith.constant 0 : i32
    %23 = arith.cmpi ne, %22, %c0_i32_14 : i32
    scf.if %23 {
      %27 = arith.fptosi %13 : vector<8x8xf32> to vector<8x8xi8>
      %c0_16 = arith.constant 0 : index
      %c0_17 = arith.constant 0 : index
      %28 = vector.load %arg10[%c0_16, %c0_17] : memref<8x8xi8, #tpu.memory_space<vmem>>, vector<8x8xi8>
      tpu.vector_store %arg10[%c0_16, %c0_17], %27 {strides = array<i32>} : memref<8x8xi8, #tpu.memory_space<vmem>>, vector<8x8xi8>,
      %c0_18 = arith.constant 0 : index
      %c0_19 = arith.constant 0 : index
      %29 = memref.load %arg8[%c0_18, %c0_19] : memref<1x1xf32, #tpu.memory_space<smem>>
      %30 = arith.mulf %20, %13 : vector<8x8xf32>
      %31 = vector.shape_cast %30 : vector<8x8xf32> to vector<1x8x8xf32>
      %cst_20 = arith.constant dense<0.000000e+00> : vector<1xf32>
      %32 = vector.multi_reduction <add>, %31, %cst_20 [1, 2] : vector<1x8x8xf32> to vector<1xf32>
      %33 = vector.shape_cast %32 : vector<1xf32> to vector<1x1x1xf32>
      %34 = vector.extract %33[0, 0, 0] : f32 from vector<1x1x1xf32>
      %35 = arith.addf %29, %34 : f32
      %c0_21 = arith.constant 0 : index
      %c0_22 = arith.constant 0 : index
      %36 = memref.load %arg8[%c0_21, %c0_22] : memref<1x1xf32, #tpu.memory_space<smem>>
      memref.store %35, %arg8[%c0_21, %c0_22] : memref<1x1xf32, #tpu.memory_space<smem>>
    } else {
    }
    %24 = arith.cmpi eq, %arg0, %arg1 : i32
    %25 = arith.extui %24 : i1 to i32
    %c0_i32_15 = arith.constant 0 : i32
    %26 = arith.cmpi ne, %25, %c0_i32_15 : i32
    scf.if %26 {
      %27 = tpu.iota {dimensions = array<i32: 0>} : vector<8x8xi32>
      %28 = tpu.iota {dimensions = array<i32: 1>} : vector<8x8xi32>
      %29 = arith.cmpi eq, %27, %28 : vector<8x8xi32>
      %cst_16 = arith.constant 0.000000e+00 : f32
      %30 = vector.broadcast %cst_16 : f32 to vector<8x8xf32>
      %31 = arith.select %29, %30, %13 : vector<8x8xi1>, vector<8x8xf32>
      %32 = arith.fptosi %31 : vector<8x8xf32> to vector<8x8xi8>
      %c0_17 = arith.constant 0 : index
      %c0_18 = arith.constant 0 : index
      %33 = vector.load %arg10[%c0_17, %c0_18] : memref<8x8xi8, #tpu.memory_space<vmem>>, vector<8x8xi8>
      tpu.vector_store %arg10[%c0_17, %c0_18], %32 {strides = array<i32>} : memref<8x8xi8, #tpu.memory_space<vmem>>, vector<8x8xi8>,
      %c0_19 = arith.constant 0 : index
      %c0_20 = arith.constant 0 : index
      %34 = memref.load %arg8[%c0_19, %c0_20] : memref<1x1xf32, #tpu.memory_space<smem>>
      %35 = arith.mulf %20, %31 : vector<8x8xf32>
      %36 = vector.shape_cast %35 : vector<8x8xf32> to vector<1x8x8xf32>
      %cst_21 = arith.constant dense<0.000000e+00> : vector<1xf32>
      %37 = vector.multi_reduction <add>, %36, %cst_21 [1, 2] : vector<1x8x8xf32> to vector<1xf32>
      %38 = vector.shape_cast %37 : vector<1xf32> to vector<1x1x1xf32>
      %39 = vector.extract %38[0, 0, 0] : f32 from vector<1x1x1xf32>
      %40 = arith.addf %34, %39 : f32
      %c0_22 = arith.constant 0 : index
      %c0_23 = arith.constant 0 : index
      %41 = memref.load %arg8[%c0_22, %c0_23] : memref<1x1xf32, #tpu.memory_space<smem>>
      memref.store %40, %arg8[%c0_22, %c0_23] : memref<1x1xf32, #tpu.memory_space<smem>>
    } else {
    }
    return
  }
  func.func @transform_0(%arg0: i32, %arg1: i32) -> (i32, i32) {
    %c0_i32 = arith.constant 0 : i32
    %c0_i32_0 = arith.constant 0 : i32
    return %arg0, %c0_i32 : i32, i32
  }
  func.func @transform_1(%arg0: i32, %arg1: i32) -> (i32, i32) {
    %c0_i32 = arith.constant 0 : i32
    %c0_i32_0 = arith.constant 0 : i32
    return %arg1, %c0_i32 : i32, i32
  }
  func.func @transform_2(%arg0: i32, %arg1: i32) -> (i32, i32) {
    %c0_i32 = arith.constant 0 : i32
    %c0_i32_0 = arith.constant 0 : i32
    return %arg0, %c0_i32 : i32, i32
  }
  func.func @transform_3(%arg0: i32, %arg1: i32) -> (i32, i32) {
    %c0_i32 = arith.constant 0 : i32
    %c0_i32_0 = arith.constant 0 : i32
    return %c0_i32, %arg1 : i32, i32
  }
  func.func @transform_4(%arg0: i32, %arg1: i32) -> (i32, i32) {
    %c0_i32 = arith.constant 0 : i32
    %c0_i32_0 = arith.constant 0 : i32
    return %arg0, %c0_i32 : i32, i32
  }
  func.func @transform_5(%arg0: i32, %arg1: i32) -> (i32, i32) {
    %c0_i32 = arith.constant 0 : i32
    %c0_i32_0 = arith.constant 0 : i32
    return %c0_i32, %arg1 : i32, i32
  }
  func.func @transform_6(%arg0: i32, %arg1: i32) -> (i32, i32) {
    %c0_i32 = arith.constant 0 : i32
    %c0_i32_0 = arith.constant 0 : i32
    return %arg0, %c0_i32 : i32, i32
  }
  func.func @transform_7(%arg0: i32, %arg1: i32) -> (i32, i32) {
    %c0_i32 = arith.constant 0 : i32
    return %arg0, %arg1 : i32, i32
  }
  func.func @transform_8(%arg0: i32, %arg1: i32) -> (i32, i32) {
    %c0_i32 = arith.constant 0 : i32
    return %arg0, %arg1 : i32, i32
  }
}

</mosaic_0001>

<llo_original>
// kernel: _pc_loss_core.1
$region0: #{_pc_loss_core.1}
  #allocation0 [shape = 'u32[]', space=smem, size = 0x4, offset = 0x4, fixed_abs, tag = 'smem constant byte address 0x4 - core index']
  #allocation1 [shape = 'u32[144,128]{1,0:T(1,128)}', space=vmem, size = 0x12000, scoped, tag = 'internal scratch']
  %s0 = inlined_call_operand.vmem [shape: f32[8,32], index: 0, kind: input, shape index: {}, may-alias: {0,1}]
  %s1 = inlined_call_operand.vmem [shape: f32[8,32], index: 1, kind: input, shape index: {}, may-alias: {0,1}]
  %s2 = inlined_call_operand.vmem [shape: f32[8,1], index: 2, kind: input, shape index: {}]
  %s3 = inlined_call_operand.vmem [shape: f32[1,8], index: 3, kind: input, shape index: {}]
  %s4 = inlined_call_operand.vmem [shape: s32[8,1], index: 4, kind: input, shape index: {}]
  %s5 = inlined_call_operand.vmem [shape: s32[1,8], index: 5, kind: input, shape index: {}]
  %s6 = inlined_call_operand.hbm [shape: f32[1,1], index: 6, kind: output, shape index: {0}]
  %s7 = inlined_call_operand.hbm [shape: f32[8,8], index: 7, kind: output, shape index: {1}]
  %s8 = inlined_call_operand.hbm [shape: s8[8,8], index: 8, kind: output, shape index: {2}]
  %9 = xla_tuple %s6, %s7, %s8
  %s10 = sld [smem:[#allocation0]]
  $region62: #{_pc_loss_core.1} parent=0
    _
  %s12 = ssub.s32 1, %s10
  %s13 = scalar_select 0, %s12, %s10
  $region1: #{_pc_loss_core.1} parent=0
    #allocation2 [shape = 'u8[512]{0}', space=smem, size = 0x200, scoped, tag = 'output window, operand 0, single buffered']
    #allocation3 [shape = 's32[1]{0}', space=sflag, size = 0x4, scoped, tag = 'scoped memory for _pc_loss_core.1']
    #allocation4 [shape = 's32[1]{0}', space=sflag, size = 0x4, scoped, tag = 'scoped memory for _pc_loss_core.1']
    #allocation5 [shape = 'u8[4096]{0}', space=vmem, size = 0x1000, scoped, tag = 'output window, operand 1, single buffered']
    #allocation6 [shape = 'u8[1024]{0}', space=vmem, size = 0x400, scoped, tag = 'output window, operand 2, single buffered']
    #allocation7 [shape = 's32[1]{0}', space=sflag, size = 0x4, scoped, tag = 'scoped memory for _pc_loss_core.1']
    %14 = vsyncpa [#allocation4], 0
    %15 = vsyncpa [#allocation3], 0
    %16 = vsyncpa [#allocation7], 0
    // Predicated region
    $region2: #{_pc_loss_core.1} parent=1 // pred_check
      _
    $region3: #{_pc_loss_core.1} parent=1 // pred_check_branch
      %18 = sbr.rel (0) target = $region5
    $region4: #{_pc_loss_core.1} parent=1 // pred_region
      _
    $region5: #{_pc_loss_core.1} parent=1 // pred_fallthru
      _
    // Predicated region
    $region6: #{_pc_loss_core.1} parent=1 // pred_check
      _
    $region7: #{_pc_loss_core.1} parent=1 // pred_check_branch
      %20 = sbr.rel (0) target = $region9
    $region8: #{_pc_loss_core.1} parent=1 // pred_region
      _
    $region9: #{_pc_loss_core.1} parent=1 // pred_fallthru
      _
    // Predicated region
    $region10: #{_pc_loss_core.1} parent=1 // pred_check
      _
    $region11: #{_pc_loss_core.1} parent=1 // pred_check_branch
      %22 = sbr.rel (0) target = $region13
    $region12: #{_pc_loss_core.1} parent=1 // pred_region
      _
    $region13: #{_pc_loss_core.1} parent=1 // pred_fallthru
      _
    // Predicated region
    $region14: #{_pc_loss_core.1} parent=1 // pred_check
      _
    $region15: #{_pc_loss_core.1} parent=1 // pred_check_branch
      %24 = sbr.rel (0) target = $region17
    $region16: #{_pc_loss_core.1} parent=1 // pred_region
      _
    $region17: #{_pc_loss_core.1} parent=1 // pred_fallthru
      _
    // Predicated region
    $region18: #{_pc_loss_core.1} parent=1 // pred_check
      _
    $region19: #{_pc_loss_core.1} parent=1 // pred_check_branch
      %26 = sbr.rel (0) target = $region21
    $region20: #{_pc_loss_core.1} parent=1 // pred_region
      _
    $region21: #{_pc_loss_core.1} parent=1 // pred_fallthru
      _
    // Predicated region
    $region22: #{_pc_loss_core.1} parent=1 // pred_check
      _
    $region23: #{_pc_loss_core.1} parent=1 // pred_check_branch
      %28 = sbr.rel (0) target = $region25
    $region24: #{_pc_loss_core.1} parent=1 // pred_region
      _
    $region25: #{_pc_loss_core.1} parent=1 // pred_fallthru
      _
    %p29 = scmp.eq.s32.totalorder 0, 0
    // Predicated region
    $region26: #{_pc_loss_core.1} parent=1 // pred_check
      %p30 = pneg %p29
    $region27: #{_pc_loss_core.1} parent=1 // pred_check_branch
      %32 = sbr.rel (%p30) target = $region29
    $region28: #{_pc_loss_core.1} parent=1 // pred_region
      %s33 = scalar_lea.smem [#allocation2], 0
      %34 = sst [smem:[%s33]] 0.0
    $region29: #{_pc_loss_core.1} parent=1 // pred_fallthru
      _
    %v35 = vld [vmem:[%s0] sm:$0xff]
    %v36 = vld [vmem:[%s1] sm:$0xff]
    %vm37 = vcmask 261120
    %v39 = vsel %vm37, %v35, 0
    %v42 = vsel %vm37, %v36, 0
    %44 = vmatprep.subr.mxu0 0.0
    %45 = vmatpush1.xpose.msra.mxu0 %v42
    %46 = vmatprep.subr.mxu0 0.0
    %47 = vmatpush1.xpose.msra.mxu0 0.0
    %48 = vmatprep.subr.mxu0 0.0
    %49 = vmatpush1.xpose.msra.mxu0 0.0
    %50 = vmatprep.subr.mxu0 0.0
    %51 = vmatpush1.xpose.msra.mxu0 0.0
    %52 = vmatprep.subr.mxu0 0.0
    %53 = vmatpush1.xpose.msra.mxu0 0.0
    %54 = vmatprep.subr.mxu0 0.0
    %55 = vmatpush1.xpose.msra.mxu0 0.0
    %56 = vmatprep.subr.mxu0 0.0
    %57 = vmatpush1.xpose.msra.mxu0 0.0
    %58 = vmatprep.subr.mxu0 0.0
    %59 = vmatpush1.xpose.msra.mxu0 0.0
    %60 = vmatprep.subr.mxu0 0.0
    %61 = vmatpush1.xpose.msra.mxu0 0.0
    %62 = vmatprep.subr.mxu0 0.0
    %63 = vmatpush1.xpose.msra.mxu0 0.0
    %64 = vmatprep.subr.mxu0 0.0
    %65 = vmatpush1.xpose.msra.mxu0 0.0
    %66 = vmatprep.subr.mxu0 0.0
    %67 = vmatpush1.xpose.msra.mxu0 0.0
    %68 = vmatprep.subr.mxu0 0.0
    %69 = vmatpush1.xpose.msra.mxu0 0.0
    %70 = vmatprep.subr.mxu0 0.0
    %71 = vmatpush1.xpose.msra.mxu0 0.0
    %72 = vmatprep.subr.mxu0 0.0
    %73 = vmatpush1.xpose.msra.mxu0 0.0
    %74 = vmatprep.subr.mxu0 0.0
    %75 = vmatpush1.xpose.msra.mxu0 0.0
    %76 = vmatprep.subr.mxu0 0.0
    %77 = vmatpush1.xpose.msra.mxu0 0.0
    %78 = vmatprep.subr.mxu0 0.0
    %79 = vmatpush1.xpose.msra.mxu0 0.0
    %80 = vmatprep.subr.mxu0 0.0
    %81 = vmatpush1.xpose.msra.mxu0 0.0
    %82 = vmatprep.subr.mxu0 0.0
    %83 = vmatpush1.xpose.msra.mxu0 0.0
    %84 = vmatprep.subr.mxu0 0.0
    %85 = vmatpush1.xpose.msra.mxu0 0.0
    %86 = vmatprep.subr.mxu0 0.0
    %87 = vmatpush1.xpose.msra.mxu0 0.0
    %88 = vmatprep.subr.mxu0 0.0
    %89 = vmatpush1.xpose.msra.mxu0 0.0
    %90 = vmatprep.subr.mxu0 0.0
    %91 = vmatpush1.xpose.msra.mxu0 0.0
    %92 = vmatprep.subr.mxu0 0.0
    %93 = vmatpush1.xpose.msra.mxu0 0.0
    %94 = vmatprep.subr.mxu0 0.0
    %95 = vmatpush1.xpose.msra.mxu0 0.0
    %96 = vmatprep.subr.mxu0 0.0
    %97 = vmatpush1.xpose.msra.mxu0 0.0
    %98 = vmatprep.subr.mxu0 0.0
    %99 = vmatpush1.xpose.msra.mxu0 0.0
    %100 = vmatprep.subr.mxu0 0.0
    %101 = vmatpush1.xpose.msra.mxu0 0.0
    %102 = vmatprep.subr.mxu0 0.0
    %103 = vmatpush1.xpose.msra.mxu0 0.0
    %104 = vmatprep.subr.mxu0 0.0
    %105 = vmatpush1.xpose.msra.mxu0 0.0
    %106 = vmatprep.subr.mxu0 0.0
    %107 = vmatpush1.xpose.msra.mxu0 0.0
    %108 = vmatprep.mubr.f32.mxu0 0.0
    %109 = vmatmul.mubr.f32.gmra.mrb[0].mxu0 %v39
    %v110 = vpop.f32.mrb[0].mxu0
    %v111 = vadd.f32 0.0, %v110
    %v112 = vpop.f32.mrb[0].mxu0
    %113 = vdwg.mxu0
    %vm114 = vcmask 64512
    %115 = vst.msk [vmem:[#allocation5] sm:$0xff] %vm114, %v111
    %v116 = vld [vmem:[%s4] sm:$0xff]
    %v117 = vld [vmem:[%s5] sm:$0x1]
    %118 = vset.pattern.permute.xlu0 0
    %119 = vperm.xlu0 %118, %v116
    %v120 = vpop.permute.xlu0 %119
    %v121 = vlaneseq
    %v122 = vshrl.u32 %v121, 7
    %v123 = vsub.s32 0, %v122
    %v124 = vrot.slane %v117, %v123
    %vm125 = vcmp.eq.s32.totalorder %v120, %v124
    %v126 = vsel %vm125, 1, 0
    %v127 = vcvt.s32.f32 %v126
    %v128 = vld [vmem:[%s2] sm:$0xff]
    %v129 = vld [vmem:[%s3] sm:$0x1]
    %131 = vset.pattern.permute.xlu0 0
    %132 = vperm.xlu0 %131, %v128
    %v133 = vpop.permute.xlu0 %132
    %v136 = vlaneseq
    %v137 = vshrl.u32 %v136, 7
    %v138 = vsub.s32 0, %v137
    %v139 = vrot.slane %v129, %v138
    %v141 = vmin.f32 %v133, %v139
    %v142 = vsub.f32 %v111, %v141
    %v143 = vmul.f32 %v142, %v142
    %p144 = scmp.ne.s32.totalorder 0, 0
    // Predicated region
    $region30: #{_pc_loss_core.1} parent=1 // pred_check
      %p145 = pneg %p144
    $region31: #{_pc_loss_core.1} parent=1 // pred_check_branch
      %147 = sbr.rel (%p145) target = $region33
    $region32: #{_pc_loss_core.1} parent=1 // pred_region
      %v148 = vtrunc.f32 %v127
      %v149 = vpack.c.f32.eXmY %v148, %v148, 312
      %v153 = vpack.c.b8 %v149, %v149
      %vm155 = vcmask 58368
      %156 = vst.msk [vmem:[#allocation6] sm:$0x3] %vm155, %v153
      %s157 = sld [smem:[#allocation2]]
      %v158 = vmul.f32 %v143, %v127
      %v159 = vsel %vm114, %v158, 0.0
      %160 = vadd.xlane.f32.xlu0 %v159
      %v161 = vpop.xlane.xlu0 %160
      %v162 = vrot.slane %v161, 4
      %v163 = vadd.f32 %v161, %v162
      %v164 = vrot.slane %v163, 2
      %v165 = vadd.f32 %v163, %v164
      %v166 = vrot.slane %v165, 1
      %v167 = vadd.f32 %v165, %v166
      %s168 = vtos %v167
      %s169 = sadd.f32 %s157, %s168
      %s170 = scalar_lea.smem [#allocation2], 0
      %171 = sst [smem:[%s170]] %s169
    $region33: #{_pc_loss_core.1} parent=1 // pred_fallthru
      _
    %p172 = scmp.eq.s32.totalorder 0, 0
    // Predicated region
    $region34: #{_pc_loss_core.1} parent=1 // pred_check
      %p173 = pneg %p172
    $region35: #{_pc_loss_core.1} parent=1 // pred_check_branch
      %175 = sbr.rel (%p173) target = $region37
    $region36: #{_pc_loss_core.1} parent=1 // pred_region
      %v176 = vlaneseq
      %v177 = vshrl.u32 %v176, 7
      %v178 = vlaneseq
      %v179 = vand.u32 %v178, 127
      %vm180 = vcmp.eq.s32.totalorder %v177, %v179
      %v181 = vsel %vm180, 0.0, %v127
      %v182 = vtrunc.f32 %v181
      %v183 = vpack.c.f32.eXmY %v182, %v182, 312
      %v187 = vpack.c.b8 %v183, %v183
      %vm189 = vcmask 58368
      %190 = vst.msk [vmem:[#allocation6] sm:$0x3] %vm189, %v187
      %s191 = sld [smem:[#allocation2]]
      %v192 = vmul.f32 %v143, %v181
      %v193 = vsel %vm114, %v192, 0.0
      %194 = vadd.xlane.f32.xlu0 %v193
      %v195 = vpop.xlane.xlu0 %194
      %v196 = vrot.slane %v195, 4
      %v197 = vadd.f32 %v195, %v196
      %v198 = vrot.slane %v197, 2
      %v199 = vadd.f32 %v197, %v198
      %v200 = vrot.slane %v199, 1
      %v201 = vadd.f32 %v199, %v200
      %s202 = vtos %v201
      %s203 = sadd.f32 %s191, %s202
      %s204 = scalar_lea.smem [#allocation2], 0
      %205 = sst [smem:[%s204]] %s203
    $region37: #{_pc_loss_core.1} parent=1 // pred_fallthru
      _
    // Predicated region
    $region38: #{_pc_loss_core.1} parent=1 // pred_check
      _
    $region39: #{_pc_loss_core.1} parent=1 // pred_check_branch
      %207 = sbr.rel (0) target = $region41
    $region40: #{_pc_loss_core.1} parent=1 // pred_region
      %s209 = ssub.s32 16, 16
      %210 = vsyncadd [#allocation4], %s209
      %213 = dma.smem_to_hbm [#allocation2], 16, %s6, [#allocation4]
    $region41: #{_pc_loss_core.1} parent=1 // pred_fallthru
      _
    // Predicated region
    $region42: #{_pc_loss_core.1} parent=1 // pred_check
      _
    $region43: #{_pc_loss_core.1} parent=1 // pred_check_branch
      %215 = sbr.rel (0) target = $region45
    $region44: #{_pc_loss_core.1} parent=1 // pred_region
      %s217 = ssub.s32 128, 128
      %218 = vsyncadd [#allocation3], %s217
      %s220 = sshll.u32 [#allocation5], 4
      %s221 = int_to_ptr.vmem [resolvable:$true] %s220
      %223 = dma.vmem_to_hbm [thread:$0]  %s221, 128, %s7, [#allocation3]
    $region45: #{_pc_loss_core.1} parent=1 // pred_fallthru
      _
    // Predicated region
    $region46: #{_pc_loss_core.1} parent=1 // pred_check
      _
    $region47: #{_pc_loss_core.1} parent=1 // pred_check_branch
      %225 = sbr.rel (0) target = $region49
    $region48: #{_pc_loss_core.1} parent=1 // pred_region
      %s227 = ssub.s32 32, 32
      %228 = vsyncadd [#allocation7], %s227
      %s230 = sshll.u32 [#allocation6], 4
      %s231 = int_to_ptr.vmem [resolvable:$true] %s230
      %233 = dma.vmem_to_hbm [thread:$0]  %s231, 32, %s8, [#allocation7]
    $region49: #{_pc_loss_core.1} parent=1 // pred_fallthru
      _
    // Predicated region
    $region50: #{_pc_loss_core.1} parent=1 // pred_check
      _
    $region51: #{_pc_loss_core.1} parent=1 // pred_check_branch
      %235 = sbr.rel (0) target = $region53
    $region52: #{_pc_loss_core.1} parent=1 // pred_region
      %236 = dma.done [#allocation4], 16
    $region53: #{_pc_loss_core.1} parent=1 // pred_fallthru
      _
    // Predicated region
    $region54: #{_pc_loss_core.1} parent=1 // pred_check
      _
    $region55: #{_pc_loss_core.1} parent=1 // pred_check_branch
      %238 = sbr.rel (0) target = $region57
    $region56: #{_pc_loss_core.1} parent=1 // pred_region
      %239 = dma.done [#allocation3], 128
    $region57: #{_pc_loss_core.1} parent=1 // pred_fallthru
      _
    // Predicated region
    $region58: #{_pc_loss_core.1} parent=1 // pred_check
      _
    $region59: #{_pc_loss_core.1} parent=1 // pred_check_branch
      %241 = sbr.rel (0) target = $region61
    $region60: #{_pc_loss_core.1} parent=1 // pred_region
      %242 = dma.done [#allocation7], 32
    $region61: #{_pc_loss_core.1} parent=1 // pred_fallthru
      _
    %243 = sfence
    %244 = vsyncpa [#allocation3], 1
    %245 = vsyncpa [#allocation7], 1
    %246 = vsyncpa [#allocation4], 1

</llo_original>
